<compile_context>
chip_gen: v7x
topology: tpu7x:2x2x1
jax: 0.10.0
libtpu: 0.0.40
codegen_flags: <defaults>
</compile_context>

<pallas_src>
import functools

import jax
import jax.numpy as jnp
from jax import lax
from jax.experimental import pallas as pl
from jax.experimental.pallas import tpu as pltpu

_LANES = 128
_MAX_TILE_ROWS = 8192      # (8192,128) f32 = 4 MiB per input per buffer
_SUB_ROWS = 512            # in-kernel sub-chunk: bounds temporaries per iteration


def _round_up(x, m):
    return ((x + m - 1) // m) * m


def _sublane_align(dtype):
    # rows must be a multiple of the sublane packing for the streamed dtype
    bits = jnp.dtype(dtype).itemsize * 8
    return max(8, 256 // bits)          # 8 for f32, 16 for bf16, 32 for int8/bool


def _num_tensorcores():
    """Parallel grid width: 2 only on multi-TensorCore-per-device chips (v7x)."""
    try:
        kind = jax.devices()[0].device_kind.lower()
    except Exception:
        return 1
    return 2 if "v7" in kind else 1


def _dice_bce_kernel(x_ref, y_ref, o_ref, *, rows, tile_rows, sub_rows,
                     steps_per_core):
    """Accumulates (8,128) partial sums of sigmoid(x)*y, sigmoid(x), y, bce."""
    c = pl.program_id(0)           # "parallel" core axis
    j = pl.program_id(1)           # "arbitrary" streaming/reduction axis

    @pl.when(j == 0)
    def _():
        o_ref[...] = jnp.zeros_like(o_ref)

    # Global first row of this tile, computed from the *unclamped* block index,
    # so clamped duplicate blocks and the partial edge block are masked out.
    row0 = (c * steps_per_core + j) * tile_rows
    n_sub = tile_rows // sub_rows

    def accumulate(masked):
        def step(i, carry):
            s_i, s_p, s_y, s_b = carry
            start = pl.multiple_of(i * sub_rows, sub_rows)
            x = x_ref[pl.ds(start, sub_rows), :].astype(jnp.float32)
            y = y_ref[pl.ds(start, sub_rows), :].astype(jnp.float32)

            # sigmoid via a single EUP tanh (no f32 divide);
            # numerically-stable BCE-with-logits (pos_weight = 1) on EUP exp/log1p.
            p = 0.5 * jnp.tanh(0.5 * x) + 0.5
            bce = jnp.maximum(x, 0.0) - x * y + jnp.log1p(jnp.exp(-jnp.abs(x)))
            ipart = p * y

            if masked:
                lr = lax.broadcasted_iota(jnp.int32, (sub_rows, _LANES), 0)
                valid = (row0 + start + lr) < rows
                zero = jnp.float32(0.0)
                # select semantics: OOB-padded rows may hold NaN/Inf garbage
                ipart = jnp.where(valid, ipart, zero)
                p = jnp.where(valid, p, zero)
                y = jnp.where(valid, y, zero)
                bce = jnp.where(valid, bce, zero)

            def red(v):
                # (sub_rows,128) -> (8,128): pure VPU vreg adds; reshape splits
                # exactly on (8,128) vreg boundaries (no relayout copy).
                return jnp.sum(v.reshape(sub_rows // 8, 8, _LANES), axis=0)

            return (s_i + red(ipart), s_p + red(p), s_y + red(y), s_b + red(bce))

        z = jnp.zeros((8, _LANES), jnp.float32)
        s_i, s_p, s_y, s_b = lax.fori_loop(0, n_sub, step, (z, z, z, z),
                                           unroll=True)
        o_ref[0, 0] += s_i     # intersection = sum(sigmoid(x) * y)
        o_ref[0, 1] += s_p     # sum(sigmoid(x))
        o_ref[0, 2] += s_y     # sum(y)
        o_ref[0, 3] += s_b     # sum(bce)

    interior = (row0 + tile_rows) <= rows

    @pl.when(interior)                    # hot path: no masking at all
    def _():
        accumulate(masked=False)

    @pl.when(jnp.logical_not(interior))   # partial edge block / clamped dups
    def _():
        accumulate(masked=True)


def dice_bce_loss(pred, gt, *, alpha=1.0, beta=1.0, smooth=0.0, eps=1e-7):
    """Matches DiceBCELoss(alpha_beta=(alpha, beta), mode='binary', bce_pos_weight=1.0)."""
    n = pred.size
    x_flat = pred.reshape(-1)
    y_flat = gt.reshape(-1)

    rows = n // _LANES
    n_bulk = rows * _LANES

    inter = jnp.float32(0.0)
    psum = jnp.float32(0.0)
    gsum = jnp.float32(0.0)
    bsum = jnp.float32(0.0)

    if rows > 0:
        # Lane-dense 2D slab of full 128-wide rows; no wrapper casts / padding.
        # (If the source last dim is already a multiple of 128 this reshape is
        # layout-preserving; otherwise XLA may insert a relayout copy — perf
        # hazard only, inputs are still streamed exactly once by the kernel.)
        x2 = x_flat[:n_bulk].reshape(rows, _LANES)
        y2 = y_flat[:n_bulk].reshape(rows, _LANES)

        num_cores = _num_tensorcores()
        align = max(_sublane_align(pred.dtype), _sublane_align(gt.dtype))

        tile_wanted = min(_MAX_TILE_ROWS, _round_up(rows, align))
        sub_rows = min(_SUB_ROWS, tile_wanted)
        tile_rows = min(_MAX_TILE_ROWS, _round_up(tile_wanted, sub_rows))

        n_blocks = pl.cdiv(rows, tile_rows)
        steps_per_core = pl.cdiv(n_blocks, num_cores)
        max_block = n_blocks - 1

        def in_map(c, j):
            # Clamp so trailing duplicate steps re-read the last block instead of
            # DMAing out of bounds; their contribution is masked in-kernel.
            return (jnp.minimum(c * steps_per_core + j, max_block), 0)

        kernel = functools.partial(
            _dice_bce_kernel, rows=rows, tile_rows=tile_rows,
            sub_rows=sub_rows, steps_per_core=steps_per_core)

        partials = pl.pallas_call(
            kernel,
            out_shape=jax.ShapeDtypeStruct((num_cores, 4, 8, _LANES), jnp.float32),
            grid_spec=pltpu.PrefetchScalarGridSpec(
                num_scalar_prefetch=0,
                grid=(num_cores, steps_per_core),
                in_specs=[pl.BlockSpec((tile_rows, _LANES), in_map),
                          pl.BlockSpec((tile_rows, _LANES), in_map)],
                out_specs=pl.BlockSpec((1, 4, 8, _LANES),
                                       lambda c, j: (c, 0, 0, 0)),
            ),
            compiler_params=pltpu.CompilerParams(
                dimension_semantics=("parallel", "arbitrary"),
                vmem_limit_bytes=48 * 1024 * 1024),
        )(x2, y2)

        sums = jnp.sum(partials, axis=(0, 2, 3))             # (4,)
        inter, psum, gsum, bsum = sums[0], sums[1], sums[2], sums[3]

    tail = n - n_bulk
    if tail:
        # < 128 leftover elements: tiny jnp epilogue instead of padding the array.
        xt = x_flat[n_bulk:].astype(jnp.float32)
        yt = y_flat[n_bulk:].astype(jnp.float32)
        pt = jax.nn.sigmoid(xt)
        bt = jnp.maximum(xt, 0.0) - xt * yt + jnp.log1p(jnp.exp(-jnp.abs(xt)))
        inter = inter + jnp.sum(pt * yt)
        psum = psum + jnp.sum(pt)
        gsum = gsum + jnp.sum(yt)
        bsum = bsum + jnp.sum(bt)

    # Dice (binary mode: (bs, 1, -1) view, dims=(0, 2) -> one global score)
    cardinality = psum + gsum
    dice_score = (2.0 * inter + smooth) / (cardinality + smooth + eps)
    dice_loss = (1.0 - dice_score) * (gsum > 0).astype(jnp.float32)

    # SoftBCEWithLogitsLoss (pos_weight=1): mean BCE-with-logits over all elements
    bce_loss = bsum / jnp.float32(n)

    return alpha * dice_loss + beta * bce_loss


def _reference(pred, gt, alpha=1.0, beta=1.0, smooth=0.0, eps=1e-7):
    x = pred.astype(jnp.float32).reshape(-1)
    y = gt.astype(jnp.float32).reshape(-1)
    p = jax.nn.sigmoid(x)
    inter = jnp.sum(p * y)
    card = jnp.sum(p) + jnp.sum(y)
    dice = (2.0 * inter + smooth) / (card + smooth + eps)
    dice_loss = (1.0 - dice) * (jnp.sum(y) > 0).astype(jnp.float32)
    bce = jnp.maximum(x, 0.0) - x * y + jnp.log1p(jnp.exp(-jnp.abs(x)))
    return alpha * dice_loss + beta * jnp.mean(bce)


if __name__ == "__main__":
    key = jax.random.PRNGKey(0)
    k1, k2 = jax.random.split(key)
    # pred: logits, gt: binary mask (same shape, NCHW)
    pred = jax.random.normal(k1, (2, 4, 16, 16), dtype=jnp.float32)
    gt = jax.random.bernoulli(k2, p=0.3, shape=(2, 4, 16, 16)).astype(jnp.float32)

    loss = dice_bce_loss(pred, gt)
    jax.block_until_ready(loss)

    ref = _reference(pred, gt)
    assert jnp.allclose(loss, ref, rtol=1e-5, atol=1e-5), (loss, ref)

    print("KERNEL_OK")
</pallas_src>

<mosaic_0001>
module attributes {stable_mosaic.version = 11 : i64} {
  func.func @_dice_bce_kernel(%arg0: i32, %arg1: i32, %arg2: memref<16x128xf32, #tpu.memory_space<vmem>>, %arg3: memref<16x128xf32, #tpu.memory_space<vmem>>, %arg4: memref<1x4x8x128xf32, #tpu.memory_space<vmem>>) attributes {dimension_semantics = [#tpu.dimension_semantics<parallel>, #tpu.dimension_semantics<arbitrary>], iteration_bounds = array<i64: 1, 1>, scalar_prefetch = 0 : i64, scratch_operands = 0 : i64, tpu.core_type = #tpu.core_type<tc>, window_params = [{transform_indices = @transform_0, window_bounds = array<i64: 16, 128>}, {transform_indices = @transform_1, window_bounds = array<i64: 16, 128>}, {transform_indices = @transform_2, window_bounds = array<i64: 1, 4, 8, 128>}]} {
    %c0_i32 = arith.constant 0 : i32
    %0 = arith.cmpi eq, %arg1, %c0_i32 : i32
    %1 = arith.extui %0 : i1 to i32
    %c0_i32_0 = arith.constant 0 : i32
    %2 = arith.cmpi ne, %1, %c0_i32_0 : i32
    scf.if %2 {
      %cst = arith.constant 0.000000e+00 : f32
      %13 = vector.broadcast %cst : f32 to vector<1x4x8x128xf32>
      %c0 = arith.constant 0 : index
      %c0_5 = arith.constant 0 : index
      %c0_6 = arith.constant 0 : index
      %c0_7 = arith.constant 0 : index
      %14 = vector.load %arg4[%c0, %c0_5, %c0_6, %c0_7] : memref<1x4x8x128xf32, #tpu.memory_space<vmem>>, vector<1x4x8x128xf32>
      tpu.vector_store %arg4[%c0, %c0_5, %c0_6, %c0_7], %13 {strides = array<i32>} : memref<1x4x8x128xf32, #tpu.memory_space<vmem>>, vector<1x4x8x128xf32>,
    } else {
    }
    %c1_i32 = arith.constant 1 : i32
    %3 = arith.muli %arg0, %c1_i32 : i32
    %4 = arith.addi %3, %arg1 : i32
    %c16_i32 = arith.constant 16 : i32
    %5 = arith.muli %4, %c16_i32 : i32
    %c16_i32_1 = arith.constant 16 : i32
    %6 = arith.addi %5, %c16_i32_1 : i32
    %c16_i32_2 = arith.constant 16 : i32
    %7 = arith.cmpi sle, %6, %c16_i32_2 : i32
    %8 = arith.extui %7 : i1 to i32
    %c0_i32_3 = arith.constant 0 : i32
    %9 = arith.cmpi ne, %8, %c0_i32_3 : i32
    scf.if %9 {
      %cst = arith.constant 0.000000e+00 : f32
      %13 = vector.broadcast %cst : f32 to vector<8x128xf32>
      %c0_i32_5 = arith.constant 0 : i32
      %c16_i32_6 = arith.constant 16 : i32
      %14 = arith.muli %c0_i32_5, %c16_i32_6 : i32
      %15 = tpu.assume_multiple %14, 16 : i32
      %16 = arith.index_cast %15 : i32 to index
      %c0 = arith.constant 0 : index
      %17 = vector.load %arg2[%16, %c0] : memref<16x128xf32, #tpu.memory_space<vmem>>, vector<16x128xf32>
      %18 = arith.index_cast %15 : i32 to index
      %c0_7 = arith.constant 0 : index
      %19 = vector.load %arg3[%18, %c0_7] : memref<16x128xf32, #tpu.memory_space<vmem>>, vector<16x128xf32>
      %cst_8 = arith.constant 5.000000e-01 : f32
      %20 = vector.broadcast %cst_8 : f32 to vector<16x128xf32>
      %21 = arith.mulf %20, %17 : vector<16x128xf32>
      %22 = math.tanh %21 : vector<16x128xf32>
      %cst_9 = arith.constant 5.000000e-01 : f32
      %23 = vector.broadcast %cst_9 : f32 to vector<16x128xf32>
      %24 = arith.mulf %23, %22 : vector<16x128xf32>
      %cst_10 = arith.constant 5.000000e-01 : f32
      %25 = vector.broadcast %cst_10 : f32 to vector<16x128xf32>
      %26 = arith.addf %24, %25 : vector<16x128xf32>
      %cst_11 = arith.constant 0.000000e+00 : f32
      %27 = vector.broadcast %cst_11 : f32 to vector<16x128xf32>
      %28 = arith.maximumf %17, %27 : vector<16x128xf32>
      %29 = arith.mulf %17, %19 : vector<16x128xf32>
      %30 = arith.subf %28, %29 : vector<16x128xf32>
      %31 = math.absf %17 : vector<16x128xf32>
      %cst_12 = arith.constant 0.000000e+00 : f32
      %32 = vector.broadcast %cst_12 : f32 to vector<16x128xf32>
      %33 = arith.subf %32, %31 : vector<16x128xf32>
      %34 = math.exp %33 : vector<16x128xf32>
      %35 = math.log1p %34 : vector<16x128xf32>
      %36 = arith.addf %30, %35 : vector<16x128xf32>
      %37 = arith.mulf %26, %19 : vector<16x128xf32>
      %38 = vector.shape_cast %37 : vector<16x128xf32> to vector<2x8x128xf32>
      %cst_13 = arith.constant dense<0.000000e+00> : vector<8x128xf32>
      %39 = vector.multi_reduction <add>, %38, %cst_13 [0] : vector<2x8x128xf32> to vector<8x128xf32>
      %40 = arith.addf %13, %39 : vector<8x128xf32>
      %41 = vector.shape_cast %26 : vector<16x128xf32> to vector<2x8x128xf32>
      %cst_14 = arith.constant dense<0.000000e+00> : vector<8x128xf32>
      %42 = vector.multi_reduction <add>, %41, %cst_14 [0] : vector<2x8x128xf32> to vector<8x128xf32>
      %43 = arith.addf %13, %42 : vector<8x128xf32>
      %44 = vector.shape_cast %19 : vector<16x128xf32> to vector<2x8x128xf32>
      %cst_15 = arith.constant dense<0.000000e+00> : vector<8x128xf32>
      %45 = vector.multi_reduction <add>, %44, %cst_15 [0] : vector<2x8x128xf32> to vector<8x128xf32>
      %46 = arith.addf %13, %45 : vector<8x128xf32>
      %47 = vector.shape_cast %36 : vector<16x128xf32> to vector<2x8x128xf32>
      %cst_16 = arith.constant dense<0.000000e+00> : vector<8x128xf32>
      %48 = vector.multi_reduction <add>, %47, %cst_16 [0] : vector<2x8x128xf32> to vector<8x128xf32>
      %49 = arith.addf %13, %48 : vector<8x128xf32>
      %c1_i32_17 = arith.constant 1 : i32
      %c0_18 = arith.constant 0 : index
      %c0_19 = arith.constant 0 : index
      %c0_20 = arith.constant 0 : index
      %c0_21 = arith.constant 0 : index
      %50 = vector.load %arg4[%c0_18, %c0_19, %c0_20, %c0_21] : memref<1x4x8x128xf32, #tpu.memory_space<vmem>>, vector<1x1x8x128xf32>
      %51 = vector.shape_cast %50 : vector<1x1x8x128xf32> to vector<8x128xf32>
      %52 = arith.addf %51, %40 : vector<8x128xf32>
      %c0_22 = arith.constant 0 : index
      %c0_23 = arith.constant 0 : index
      %c0_24 = arith.constant 0 : index
      %c0_25 = arith.constant 0 : index
      %53 = vector.load %arg4[%c0_22, %c0_23, %c0_24, %c0_25] : memref<1x4x8x128xf32, #tpu.memory_space<vmem>>, vector<1x1x8x128xf32>
      %54 = vector.shape_cast %53 : vector<1x1x8x128xf32> to vector<8x128xf32>
      %55 = vector.shape_cast %52 : vector<8x128xf32> to vector<1x1x8x128xf32>
      tpu.vector_store %arg4[%c0_22, %c0_23, %c0_24, %c0_25], %55 {strides = array<i32>} : memref<1x4x8x128xf32, #tpu.memory_space<vmem>>, vector<1x1x8x128xf32>,
      %c0_26 = arith.constant 0 : index
      %c1 = arith.constant 1 : index
      %c0_27 = arith.constant 0 : index
      %c0_28 = arith.constant 0 : index
      %56 = vector.load %arg4[%c0_26, %c1, %c0_27, %c0_28] : memref<1x4x8x128xf32, #tpu.memory_space<vmem>>, vector<1x1x8x128xf32>
      %57 = vector.shape_cast %56 : vector<1x1x8x128xf32> to vector<8x128xf32>
      %58 = arith.addf %57, %43 : vector<8x128xf32>
      %c0_29 = arith.constant 0 : index
      %c1_30 = arith.constant 1 : index
      %c0_31 = arith.constant 0 : index
      %c0_32 = arith.constant 0 : index
      %59 = vector.load %arg4[%c0_29, %c1_30, %c0_31, %c0_32] : memref<1x4x8x128xf32, #tpu.memory_space<vmem>>, vector<1x1x8x128xf32>
      %60 = vector.shape_cast %59 : vector<1x1x8x128xf32> to vector<8x128xf32>
      %61 = vector.shape_cast %58 : vector<8x128xf32> to vector<1x1x8x128xf32>
      tpu.vector_store %arg4[%c0_29, %c1_30, %c0_31, %c0_32], %61 {strides = array<i32>} : memref<1x4x8x128xf32, #tpu.memory_space<vmem>>, vector<1x1x8x128xf32>,
      %c0_33 = arith.constant 0 : index
      %c2 = arith.constant 2 : index
      %c0_34 = arith.constant 0 : index
      %c0_35 = arith.constant 0 : index
      %62 = vector.load %arg4[%c0_33, %c2, %c0_34, %c0_35] : memref<1x4x8x128xf32, #tpu.memory_space<vmem>>, vector<1x1x8x128xf32>
      %63 = vector.shape_cast %62 : vector<1x1x8x128xf32> to vector<8x128xf32>
      %64 = arith.addf %63, %46 : vector<8x128xf32>
      %c0_36 = arith.constant 0 : index
      %c2_37 = arith.constant 2 : index
      %c0_38 = arith.constant 0 : index
      %c0_39 = arith.constant 0 : index
      %65 = vector.load %arg4[%c0_36, %c2_37, %c0_38, %c0_39] : memref<1x4x8x128xf32, #tpu.memory_space<vmem>>, vector<1x1x8x128xf32>
      %66 = vector.shape_cast %65 : vector<1x1x8x128xf32> to vector<8x128xf32>
      %67 = vector.shape_cast %64 : vector<8x128xf32> to vector<1x1x8x128xf32>
      tpu.vector_store %arg4[%c0_36, %c2_37, %c0_38, %c0_39], %67 {strides = array<i32>} : memref<1x4x8x128xf32, #tpu.memory_space<vmem>>, vector<1x1x8x128xf32>,
      %c0_40 = arith.constant 0 : index
      %c3 = arith.constant 3 : index
      %c0_41 = arith.constant 0 : index
      %c0_42 = arith.constant 0 : index
      %68 = vector.load %arg4[%c0_40, %c3, %c0_41, %c0_42] : memref<1x4x8x128xf32, #tpu.memory_space<vmem>>, vector<1x1x8x128xf32>
      %69 = vector.shape_cast %68 : vector<1x1x8x128xf32> to vector<8x128xf32>
      %70 = arith.addf %69, %49 : vector<8x128xf32>
      %c0_43 = arith.constant 0 : index
      %c3_44 = arith.constant 3 : index
      %c0_45 = arith.constant 0 : index
      %c0_46 = arith.constant 0 : index
      %71 = vector.load %arg4[%c0_43, %c3_44, %c0_45, %c0_46] : memref<1x4x8x128xf32, #tpu.memory_space<vmem>>, vector<1x1x8x128xf32>
      %72 = vector.shape_cast %71 : vector<1x1x8x128xf32> to vector<8x128xf32>
      %73 = vector.shape_cast %70 : vector<8x128xf32> to vector<1x1x8x128xf32>
      tpu.vector_store %arg4[%c0_43, %c3_44, %c0_45, %c0_46], %73 {strides = array<i32>} : memref<1x4x8x128xf32, #tpu.memory_space<vmem>>, vector<1x1x8x128xf32>,
    } else {
    }
    %true = arith.constant true
    %10 = arith.xori %7, %true : i1
    %11 = arith.extui %10 : i1 to i32
    %c0_i32_4 = arith.constant 0 : i32
    %12 = arith.cmpi ne, %11, %c0_i32_4 : i32
    scf.if %12 {
      %cst = arith.constant 0.000000e+00 : f32
      %13 = vector.broadcast %cst : f32 to vector<8x128xf32>
      %c0_i32_5 = arith.constant 0 : i32
      %c16_i32_6 = arith.constant 16 : i32
      %14 = arith.muli %c0_i32_5, %c16_i32_6 : i32
      %15 = tpu.assume_multiple %14, 16 : i32
      %16 = arith.index_cast %15 : i32 to index
      %c0 = arith.constant 0 : index
      %17 = vector.load %arg2[%16, %c0] : memref<16x128xf32, #tpu.memory_space<vmem>>, vector<16x128xf32>
      %18 = arith.index_cast %15 : i32 to index
      %c0_7 = arith.constant 0 : index
      %19 = vector.load %arg3[%18, %c0_7] : memref<16x128xf32, #tpu.memory_space<vmem>>, vector<16x128xf32>
      %cst_8 = arith.constant 5.000000e-01 : f32
      %20 = vector.broadcast %cst_8 : f32 to vector<16x128xf32>
      %21 = arith.mulf %20, %17 : vector<16x128xf32>
      %22 = math.tanh %21 : vector<16x128xf32>
      %cst_9 = arith.constant 5.000000e-01 : f32
      %23 = vector.broadcast %cst_9 : f32 to vector<16x128xf32>
      %24 = arith.mulf %23, %22 : vector<16x128xf32>
      %cst_10 = arith.constant 5.000000e-01 : f32
      %25 = vector.broadcast %cst_10 : f32 to vector<16x128xf32>
      %26 = arith.addf %24, %25 : vector<16x128xf32>
      %cst_11 = arith.constant 0.000000e+00 : f32
      %27 = vector.broadcast %cst_11 : f32 to vector<16x128xf32>
      %28 = arith.maximumf %17, %27 : vector<16x128xf32>
      %29 = arith.mulf %17, %19 : vector<16x128xf32>
      %30 = arith.subf %28, %29 : vector<16x128xf32>
      %31 = math.absf %17 : vector<16x128xf32>
      %cst_12 = arith.constant 0.000000e+00 : f32
      %32 = vector.broadcast %cst_12 : f32 to vector<16x128xf32>
      %33 = arith.subf %32, %31 : vector<16x128xf32>
      %34 = math.exp %33 : vector<16x128xf32>
      %35 = math.log1p %34 : vector<16x128xf32>
      %36 = arith.addf %30, %35 : vector<16x128xf32>
      %37 = arith.mulf %26, %19 : vector<16x128xf32>
      %38 = tpu.iota {dimensions = array<i32: 0>} : vector<16x128xi32>
      %39 = arith.addi %5, %15 : i32
      %40 = vector.broadcast %39 : i32 to vector<16x128xi32>
      %41 = arith.addi %40, %38 : vector<16x128xi32>
      %c16_i32_13 = arith.constant 16 : i32
      %42 = vector.broadcast %c16_i32_13 : i32 to vector<16x128xi32>
      %43 = arith.cmpi slt, %41, %42 : vector<16x128xi32>
      %cst_14 = arith.constant 0.000000e+00 : f32
      %44 = vector.broadcast %cst_14 : f32 to vector<16x128xf32>
      %45 = arith.select %43, %37, %44 : vector<16x128xi1>, vector<16x128xf32>
      %cst_15 = arith.constant 0.000000e+00 : f32
      %46 = vector.broadcast %cst_15 : f32 to vector<16x128xf32>
      %47 = arith.select %43, %26, %46 : vector<16x128xi1>, vector<16x128xf32>
      %cst_16 = arith.constant 0.000000e+00 : f32
      %48 = vector.broadcast %cst_16 : f32 to vector<16x128xf32>
      %49 = arith.select %43, %19, %48 : vector<16x128xi1>, vector<16x128xf32>
      %cst_17 = arith.constant 0.000000e+00 : f32
      %50 = vector.broadcast %cst_17 : f32 to vector<16x128xf32>
      %51 = arith.select %43, %36, %50 : vector<16x128xi1>, vector<16x128xf32>
      %52 = vector.shape_cast %45 : vector<16x128xf32> to vector<2x8x128xf32>
      %cst_18 = arith.constant dense<0.000000e+00> : vector<8x128xf32>
      %53 = vector.multi_reduction <add>, %52, %cst_18 [0] : vector<2x8x128xf32> to vector<8x128xf32>
      %54 = arith.addf %13, %53 : vector<8x128xf32>
      %55 = vector.shape_cast %47 : vector<16x128xf32> to vector<2x8x128xf32>
      %cst_19 = arith.constant dense<0.000000e+00> : vector<8x128xf32>
      %56 = vector.multi_reduction <add>, %55, %cst_19 [0] : vector<2x8x128xf32> to vector<8x128xf32>
      %57 = arith.addf %13, %56 : vector<8x128xf32>
      %58 = vector.shape_cast %49 : vector<16x128xf32> to vector<2x8x128xf32>
      %cst_20 = arith.constant dense<0.000000e+00> : vector<8x128xf32>
      %59 = vector.multi_reduction <add>, %58, %cst_20 [0] : vector<2x8x128xf32> to vector<8x128xf32>
      %60 = arith.addf %13, %59 : vector<8x128xf32>
      %61 = vector.shape_cast %51 : vector<16x128xf32> to vector<2x8x128xf32>
      %cst_21 = arith.constant dense<0.000000e+00> : vector<8x128xf32>
      %62 = vector.multi_reduction <add>, %61, %cst_21 [0] : vector<2x8x128xf32> to vector<8x128xf32>
      %63 = arith.addf %13, %62 : vector<8x128xf32>
      %c1_i32_22 = arith.constant 1 : i32
      %c0_23 = arith.constant 0 : index
      %c0_24 = arith.constant 0 : index
      %c0_25 = arith.constant 0 : index
      %c0_26 = arith.constant 0 : index
      %64 = vector.load %arg4[%c0_23, %c0_24, %c0_25, %c0_26] : memref<1x4x8x128xf32, #tpu.memory_space<vmem>>, vector<1x1x8x128xf32>
      %65 = vector.shape_cast %64 : vector<1x1x8x128xf32> to vector<8x128xf32>
      %66 = arith.addf %65, %54 : vector<8x128xf32>
      %c0_27 = arith.constant 0 : index
      %c0_28 = arith.constant 0 : index
      %c0_29 = arith.constant 0 : index
      %c0_30 = arith.constant 0 : index
      %67 = vector.load %arg4[%c0_27, %c0_28, %c0_29, %c0_30] : memref<1x4x8x128xf32, #tpu.memory_space<vmem>>, vector<1x1x8x128xf32>
      %68 = vector.shape_cast %67 : vector<1x1x8x128xf32> to vector<8x128xf32>
      %69 = vector.shape_cast %66 : vector<8x128xf32> to vector<1x1x8x128xf32>
      tpu.vector_store %arg4[%c0_27, %c0_28, %c0_29, %c0_30], %69 {strides = array<i32>} : memref<1x4x8x128xf32, #tpu.memory_space<vmem>>, vector<1x1x8x128xf32>,
      %c0_31 = arith.constant 0 : index
      %c1 = arith.constant 1 : index
      %c0_32 = arith.constant 0 : index
      %c0_33 = arith.constant 0 : index
      %70 = vector.load %arg4[%c0_31, %c1, %c0_32, %c0_33] : memref<1x4x8x128xf32, #tpu.memory_space<vmem>>, vector<1x1x8x128xf32>
      %71 = vector.shape_cast %70 : vector<1x1x8x128xf32> to vector<8x128xf32>
      %72 = arith.addf %71, %57 : vector<8x128xf32>
      %c0_34 = arith.constant 0 : index
      %c1_35 = arith.constant 1 : index
      %c0_36 = arith.constant 0 : index
      %c0_37 = arith.constant 0 : index
      %73 = vector.load %arg4[%c0_34, %c1_35, %c0_36, %c0_37] : memref<1x4x8x128xf32, #tpu.memory_space<vmem>>, vector<1x1x8x128xf32>
      %74 = vector.shape_cast %73 : vector<1x1x8x128xf32> to vector<8x128xf32>
      %75 = vector.shape_cast %72 : vector<8x128xf32> to vector<1x1x8x128xf32>
      tpu.vector_store %arg4[%c0_34, %c1_35, %c0_36, %c0_37], %75 {strides = array<i32>} : memref<1x4x8x128xf32, #tpu.memory_space<vmem>>, vector<1x1x8x128xf32>,
      %c0_38 = arith.constant 0 : index
      %c2 = arith.constant 2 : index
      %c0_39 = arith.constant 0 : index
      %c0_40 = arith.constant 0 : index
      %76 = vector.load %arg4[%c0_38, %c2, %c0_39, %c0_40] : memref<1x4x8x128xf32, #tpu.memory_space<vmem>>, vector<1x1x8x128xf32>
      %77 = vector.shape_cast %76 : vector<1x1x8x128xf32> to vector<8x128xf32>
      %78 = arith.addf %77, %60 : vector<8x128xf32>
      %c0_41 = arith.constant 0 : index
      %c2_42 = arith.constant 2 : index
      %c0_43 = arith.constant 0 : index
      %c0_44 = arith.constant 0 : index
      %79 = vector.load %arg4[%c0_41, %c2_42, %c0_43, %c0_44] : memref<1x4x8x128xf32, #tpu.memory_space<vmem>>, vector<1x1x8x128xf32>
      %80 = vector.shape_cast %79 : vector<1x1x8x128xf32> to vector<8x128xf32>
      %81 = vector.shape_cast %78 : vector<8x128xf32> to vector<1x1x8x128xf32>
      tpu.vector_store %arg4[%c0_41, %c2_42, %c0_43, %c0_44], %81 {strides = array<i32>} : memref<1x4x8x128xf32, #tpu.memory_space<vmem>>, vector<1x1x8x128xf32>,
      %c0_45 = arith.constant 0 : index
      %c3 = arith.constant 3 : index
      %c0_46 = arith.constant 0 : index
      %c0_47 = arith.constant 0 : index
      %82 = vector.load %arg4[%c0_45, %c3, %c0_46, %c0_47] : memref<1x4x8x128xf32, #tpu.memory_space<vmem>>, vector<1x1x8x128xf32>
      %83 = vector.shape_cast %82 : vector<1x1x8x128xf32> to vector<8x128xf32>
      %84 = arith.addf %83, %63 : vector<8x128xf32>
      %c0_48 = arith.constant 0 : index
      %c3_49 = arith.constant 3 : index
      %c0_50 = arith.constant 0 : index
      %c0_51 = arith.constant 0 : index
      %85 = vector.load %arg4[%c0_48, %c3_49, %c0_50, %c0_51] : memref<1x4x8x128xf32, #tpu.memory_space<vmem>>, vector<1x1x8x128xf32>
      %86 = vector.shape_cast %85 : vector<1x1x8x128xf32> to vector<8x128xf32>
      %87 = vector.shape_cast %84 : vector<8x128xf32> to vector<1x1x8x128xf32>
      tpu.vector_store %arg4[%c0_48, %c3_49, %c0_50, %c0_51], %87 {strides = array<i32>} : memref<1x4x8x128xf32, #tpu.memory_space<vmem>>, vector<1x1x8x128xf32>,
    } else {
    }
    return
  }
  func.func @transform_0(%arg0: i32, %arg1: i32) -> (i32, i32) {
    %c1_i32 = arith.constant 1 : i32
    %0 = arith.muli %arg0, %c1_i32 : i32
    %1 = arith.addi %0, %arg1 : i32
    %c0_i32 = arith.constant 0 : i32
    %2 = arith.minsi %1, %c0_i32 : i32
    %c0_i32_0 = arith.constant 0 : i32
    %c0_i32_1 = arith.constant 0 : i32
    return %2, %c0_i32_0 : i32, i32
  }
  func.func @transform_1(%arg0: i32, %arg1: i32) -> (i32, i32) {
    %c1_i32 = arith.constant 1 : i32
    %0 = arith.muli %arg0, %c1_i32 : i32
    %1 = arith.addi %0, %arg1 : i32
    %c0_i32 = arith.constant 0 : i32
    %2 = arith.minsi %1, %c0_i32 : i32
    %c0_i32_0 = arith.constant 0 : i32
    %c0_i32_1 = arith.constant 0 : i32
    return %2, %c0_i32_0 : i32, i32
  }
  func.func @transform_2(%arg0: i32, %arg1: i32) -> (i32, i32, i32, i32) {
    %c0_i32 = arith.constant 0 : i32
    %c0_i32_0 = arith.constant 0 : i32
    %c0_i32_1 = arith.constant 0 : i32
    %c0_i32_2 = arith.constant 0 : i32
    return %arg0, %c0_i32, %c0_i32_0, %c0_i32_1 : i32, i32, i32, i32
  }
}

</mosaic_0001>

<llo_original>
// kernel: tpu_custom_call.1
$region0: #{tpu_custom_call.1}
  #allocation0 [shape = 'u32[]', space=smem, size = 0x4, offset = 0x4, fixed_abs, tag = 'smem constant byte address 0x4 - core index']
  #allocation1 [shape = 'u32[144,128]{1,0:T(1,128)}', space=vmem, size = 0x12000, scoped, tag = 'internal scratch']
  %s0 = inlined_call_operand.hbm [shape: f32[16,128], index: 0, kind: input, shape index: {}]
  %s1 = inlined_call_operand.hbm [shape: f32[16,128], index: 1, kind: input, shape index: {}]
  %s2 = inlined_call_operand.hbm [shape: f32[1,4,8,128], index: 2, kind: output, shape index: {}]
  %s3 = sld [smem:[#allocation0]]
  $region38: #{tpu_custom_call.1} parent=0
    _
  %s5 = ssub.s32 1, %s3
  %s6 = scalar_select 0, %s5, %s3
  $region1: #{tpu_custom_call.1} parent=0
    #allocation2 [shape = 'u8[8192]{0}', space=vmem, size = 0x2000, scoped, tag = 'input window, operand 0, single buffered']
    #allocation3 [shape = 's32[1]{0}', space=sflag, size = 0x4, scoped, tag = 'scoped memory for tpu_custom_call.1']
    #allocation4 [shape = 's32[1]{0}', space=sflag, size = 0x4, scoped, tag = 'scoped memory for tpu_custom_call.1']
    #allocation5 [shape = 'u8[8192]{0}', space=vmem, size = 0x2000, scoped, tag = 'input window, operand 1, single buffered']
    #allocation6 [shape = 's32[1]{0}', space=sflag, size = 0x4, scoped, tag = 'scoped memory for tpu_custom_call.1']
    #allocation7 [shape = 'u8[16384]{0}', space=vmem, size = 0x4000, scoped, tag = 'output window, operand 0, single buffered']
    %7 = vsyncpa [#allocation3], 0
    %8 = vsyncpa [#allocation6], 0
    %9 = vsyncpa [#allocation4], 0
    // Predicated region
    $region2: #{tpu_custom_call.1} parent=1 // pred_check
      _
    $region3: #{tpu_custom_call.1} parent=1 // pred_check_branch
      %11 = sbr.rel (0) target = $region5
    $region4: #{tpu_custom_call.1} parent=1 // pred_region
      %s12 = sadd.s32 0, 0
      %p13 = scmp.lt.s32.totalorder %s12, 0
      %s14 = scalar_select %p13, %s12, 0
      %s15 = smul.u32 2, %s14
      %s17 = ssub.s32 256, 256
      %18 = vsyncadd [#allocation3], %s17
      %s19 = smul.addr %s15, 128
      %s20 = scalar_lea.hbm %s0, %s19
      %s21 = sshll.u32 [#allocation2], 4
      %s22 = int_to_ptr.vmem [resolvable:$true] %s21
      %27 = dma.hbm_to_vmem [thread:$0]  %s20, 256, %s22, [#allocation3], 128, 128, 8
    $region5: #{tpu_custom_call.1} parent=1 // pred_fallthru
      _
    // Predicated region
    $region6: #{tpu_custom_call.1} parent=1 // pred_check
      _
    $region7: #{tpu_custom_call.1} parent=1 // pred_check_branch
      %29 = sbr.rel (0) target = $region9
    $region8: #{tpu_custom_call.1} parent=1 // pred_region
      %s30 = sadd.s32 0, 0
      %p31 = scmp.lt.s32.totalorder %s30, 0
      %s32 = scalar_select %p31, %s30, 0
      %s33 = smul.u32 2, %s32
      %s35 = ssub.s32 256, 256
      %36 = vsyncadd [#allocation6], %s35
      %s37 = smul.addr %s33, 128
      %s38 = scalar_lea.hbm %s1, %s37
      %s39 = sshll.u32 [#allocation5], 4
      %s40 = int_to_ptr.vmem [resolvable:$true] %s39
      %45 = dma.hbm_to_vmem [thread:$0]  %s38, 256, %s40, [#allocation6], 128, 128, 8
    $region9: #{tpu_custom_call.1} parent=1 // pred_fallthru
      _
    // Predicated region
    $region10: #{tpu_custom_call.1} parent=1 // pred_check
      _
    $region11: #{tpu_custom_call.1} parent=1 // pred_check_branch
      %47 = sbr.rel (0) target = $region13
    $region12: #{tpu_custom_call.1} parent=1 // pred_region
      %48 = dma.done [#allocation3], 256
    $region13: #{tpu_custom_call.1} parent=1 // pred_fallthru
      _
    // Predicated region
    $region14: #{tpu_custom_call.1} parent=1 // pred_check
      _
    $region15: #{tpu_custom_call.1} parent=1 // pred_check_branch
      %50 = sbr.rel (0) target = $region17
    $region16: #{tpu_custom_call.1} parent=1 // pred_region
      %51 = dma.done [#allocation6], 256
    $region17: #{tpu_custom_call.1} parent=1 // pred_fallthru
      _
    %s52 = sadd.s32 0, 0
    %p53 = scmp.lt.s32.totalorder %s52, 0
    %s54 = scalar_select %p53, %s52, 0
    %s55 = smul.u32 2, %s54
    %s56 = sadd.s32 0, 0
    %p57 = scmp.lt.s32.totalorder %s56, 0
    %s58 = scalar_select %p57, %s56, 0
    %s59 = smul.u32 2, %s58
    %p60 = scmp.eq.s32.totalorder 0, 0
    // Predicated region
    $region18: #{tpu_custom_call.1} parent=1 // pred_check
      %p61 = pneg %p60
    $region19: #{tpu_custom_call.1} parent=1 // pred_check_branch
      %63 = sbr.rel (%p61) target = $region21
    $region20: #{tpu_custom_call.1} parent=1 // pred_region
      %64 = vst [vmem:[#allocation7] sm:$0xff] 0.0
      %65 = vst [vmem:[#allocation7 + $0x8] sm:$0xff] 0.0
      %66 = vst [vmem:[#allocation7 + $0x10] sm:$0xff] 0.0
      %67 = vst [vmem:[#allocation7 + $0x18] sm:$0xff] 0.0
    $region21: #{tpu_custom_call.1} parent=1 // pred_fallthru
      _
    %s68 = sadd.s32 0, 0
    %s69 = smul.u32 %s68, 16
    %s70 = sadd.s32 %s69, 16
    %p71 = scmp.le.s32.totalorder %s70, 16
    // Predicated region
    $region22: #{tpu_custom_call.1} parent=1 // pred_check
      %p72 = pneg %p71
    $region23: #{tpu_custom_call.1} parent=1 // pred_check_branch
      %74 = sbr.rel (%p72) target = $region25
    $region24: #{tpu_custom_call.1} parent=1 // pred_region
      %v75 = vld [vmem:[#allocation2] sm:$0xff]
      %v76 = vld [vmem:[#allocation2 + $0x8] sm:$0xff]
      %v77 = vld [vmem:[#allocation5] sm:$0xff]
      %v78 = vld [vmem:[#allocation5 + $0x8] sm:$0xff]
      %v79 = vmul.f32 %v75, 0.5
      %v80 = vmul.f32 %v76, 0.5
      %v81 = vtanh.pop %v79
      %v82 = vtanh.pop %v80
      %v83 = vmul.f32 %v81, 0.5
      %v84 = vmul.f32 %v82, 0.5
      %v85 = vadd.f32 %v83, 0.5
      %v86 = vadd.f32 %v84, 0.5
      %v87 = vmax.f32 %v75, 0.0
      %v88 = vmax.f32 %v76, 0.0
      %v89 = vmul.f32 %v75, %v77
      %v90 = vmul.f32 %v76, %v78
      %v91 = vsub.f32 %v87, %v89
      %v92 = vsub.f32 %v88, %v90
      %v93 = vand.u32 2147483647, %v75
      %v94 = vand.u32 2147483647, %v76
      %v95 = vsub.f32 0.0, %v93
      %v96 = vsub.f32 0.0, %v94
      %v97 = vmul.f32 %v95, 1.442695
      %v98 = vpow.pop %v97
      %v99 = vmul.f32 %v96, 1.442695
      %v100 = vpow.pop %v99
      %v101 = vadd.f32 %v98, 1.0
      %v102 = vlog2.pop %v101
      %v103 = vmul.f32 %v102, 0.6931472
      %v104 = vmul.f32 -0.5, %v98
      %v105 = vadd.f32 %v104, 1.0
      %v106 = vmul.f32 %v105, %v98
      %v107 = vand.u32 2147483647, %v98
      %vm108 = vcmp.lt.f32.partialorder %v107, 0.0004427343
      %v109 = vsel %vm108, %v106, %v103
      %v110 = vadd.f32 %v100, 1.0
      %v111 = vlog2.pop %v110
      %v112 = vmul.f32 %v111, 0.6931472
      %v113 = vmul.f32 -0.5, %v100
      %v114 = vadd.f32 %v113, 1.0
      %v115 = vmul.f32 %v114, %v100
      %v116 = vand.u32 2147483647, %v100
      %vm117 = vcmp.lt.f32.partialorder %v116, 0.0004427343
      %v118 = vsel %vm117, %v115, %v112
      %v119 = vadd.f32 %v91, %v109
      %v120 = vadd.f32 %v92, %v118
      %v121 = vmul.f32 %v85, %v77
      %v122 = vmul.f32 %v86, %v78
      %v123 = vadd.f32 %v121, %v122
      %v124 = vadd.f32 %v123, 0.0
      %v125 = vadd.f32 %v85, %v86
      %v126 = vadd.f32 %v125, 0.0
      %v127 = vadd.f32 %v77, %v78
      %v128 = vadd.f32 %v127, 0.0
      %v129 = vadd.f32 %v119, %v120
      %v130 = vadd.f32 %v129, 0.0
      %v131 = vld [vmem:[#allocation7] sm:$0xff]
      %v132 = vadd.f32 %v131, %v124
      %133 = vst [vmem:[#allocation7] sm:$0xff] %v132
      %s134 = scalar_lea.vmem [#allocation7], 8
      %v135 = vld [vmem:[%s134] sm:$0xff]
      %v136 = vadd.f32 %v135, %v126
      %137 = vst [vmem:[%s134] sm:$0xff] %v136
      %s138 = scalar_lea.vmem [#allocation7], 16
      %v139 = vld [vmem:[%s138] sm:$0xff]
      %v140 = vadd.f32 %v139, %v128
      %141 = vst [vmem:[%s138] sm:$0xff] %v140
      %s142 = scalar_lea.vmem [#allocation7], 24
      %v143 = vld [vmem:[%s142] sm:$0xff]
      %v144 = vadd.f32 %v143, %v130
      %145 = vst [vmem:[%s142] sm:$0xff] %v144
    $region25: #{tpu_custom_call.1} parent=1 // pred_fallthru
      _
    %p146 = scmp.gt.s32.totalorder %s70, 16
    // Predicated region
    $region26: #{tpu_custom_call.1} parent=1 // pred_check
      %p147 = pneg %p146
    $region27: #{tpu_custom_call.1} parent=1 // pred_check_branch
      %149 = sbr.rel (%p147) target = $region29
    $region28: #{tpu_custom_call.1} parent=1 // pred_region
      %v150 = vld [vmem:[#allocation2] sm:$0xff]
      %v151 = vld [vmem:[#allocation2 + $0x8] sm:$0xff]
      %v152 = vld [vmem:[#allocation5] sm:$0xff]
      %v153 = vld [vmem:[#allocation5 + $0x8] sm:$0xff]
      %v154 = vmul.f32 %v150, 0.5
      %v155 = vmul.f32 %v151, 0.5
      %v156 = vtanh.pop %v154
      %v157 = vtanh.pop %v155
      %v158 = vmul.f32 %v156, 0.5
      %v159 = vmul.f32 %v157, 0.5
      %v160 = vadd.f32 %v158, 0.5
      %v161 = vadd.f32 %v159, 0.5
      %v162 = vmax.f32 %v150, 0.0
      %v163 = vmax.f32 %v151, 0.0
      %v164 = vmul.f32 %v150, %v152
      %v165 = vmul.f32 %v151, %v153
      %v166 = vsub.f32 %v162, %v164
      %v167 = vsub.f32 %v163, %v165
      %v168 = vand.u32 2147483647, %v150
      %v169 = vand.u32 2147483647, %v151
      %v170 = vsub.f32 0.0, %v168
      %v171 = vsub.f32 0.0, %v169
      %v172 = vmul.f32 %v170, 1.442695
      %v173 = vpow.pop %v172
      %v174 = vmul.f32 %v171, 1.442695
      %v175 = vpow.pop %v174
      %v176 = vadd.f32 %v173, 1.0
      %v177 = vlog2.pop %v176
      %v178 = vmul.f32 %v177, 0.6931472
      %v179 = vmul.f32 -0.5, %v173
      %v180 = vadd.f32 %v179, 1.0
      %v181 = vmul.f32 %v180, %v173
      %v182 = vand.u32 2147483647, %v173
      %vm183 = vcmp.lt.f32.partialorder %v182, 0.0004427343
      %v184 = vsel %vm183, %v181, %v178
      %v185 = vadd.f32 %v175, 1.0
      %v186 = vlog2.pop %v185
      %v187 = vmul.f32 %v186, 0.6931472
      %v188 = vmul.f32 -0.5, %v175
      %v189 = vadd.f32 %v188, 1.0
      %v190 = vmul.f32 %v189, %v175
      %v191 = vand.u32 2147483647, %v175
      %vm192 = vcmp.lt.f32.partialorder %v191, 0.0004427343
      %v193 = vsel %vm192, %v190, %v187
      %v194 = vadd.f32 %v166, %v184
      %v195 = vadd.f32 %v167, %v193
      %v196 = vmul.f32 %v160, %v152
      %v197 = vmul.f32 %v161, %v153
      %v198 = vlaneseq
      %v199 = vshrl.u32 %v198, 7
      %v200 = vadd.s32 %v199, 8
      %s201 = sadd.s32 %s69, 0
      %v202 = vstv %s201
      %v203 = vadd.s32 %v202, %v199
      %v204 = vadd.s32 %v202, %v200
      %vm205 = vcmp.lt.s32.totalorder %v203, 16
      %vm206 = vcmp.lt.s32.totalorder %v204, 16
      %v207 = vsel %vm205, %v196, 0.0
      %v208 = vsel %vm206, %v197, 0.0
      %v209 = vsel %vm205, %v160, 0.0
      %v210 = vsel %vm206, %v161, 0.0
      %v211 = vsel %vm205, %v152, 0.0
      %v212 = vsel %vm206, %v153, 0.0
      %v213 = vsel %vm205, %v194, 0.0
      %v214 = vsel %vm206, %v195, 0.0
      %v215 = vadd.f32 %v207, %v208
      %v216 = vadd.f32 %v215, 0.0
      %v217 = vadd.f32 %v209, %v210
      %v218 = vadd.f32 %v217, 0.0
      %v219 = vadd.f32 %v211, %v212
      %v220 = vadd.f32 %v219, 0.0
      %v221 = vadd.f32 %v213, %v214
      %v222 = vadd.f32 %v221, 0.0
      %v223 = vld [vmem:[#allocation7] sm:$0xff]
      %v224 = vadd.f32 %v223, %v216
      %225 = vst [vmem:[#allocation7] sm:$0xff] %v224
      %s226 = scalar_lea.vmem [#allocation7], 8
      %v227 = vld [vmem:[%s226] sm:$0xff]
      %v228 = vadd.f32 %v227, %v218
      %229 = vst [vmem:[%s226] sm:$0xff] %v228
      %s230 = scalar_lea.vmem [#allocation7], 16
      %v231 = vld [vmem:[%s230] sm:$0xff]
      %v232 = vadd.f32 %v231, %v220
      %233 = vst [vmem:[%s230] sm:$0xff] %v232
      %s234 = scalar_lea.vmem [#allocation7], 24
      %v235 = vld [vmem:[%s234] sm:$0xff]
      %v236 = vadd.f32 %v235, %v222
      %237 = vst [vmem:[%s234] sm:$0xff] %v236
    $region29: #{tpu_custom_call.1} parent=1 // pred_fallthru
      _
    // Predicated region
    $region30: #{tpu_custom_call.1} parent=1 // pred_check
      _
    $region31: #{tpu_custom_call.1} parent=1 // pred_check_branch
      %239 = sbr.rel (0) target = $region33
    $region32: #{tpu_custom_call.1} parent=1 // pred_region
      %s241 = ssub.s32 512, 512
      %242 = vsyncadd [#allocation4], %s241
      %s243 = sshll.u32 [#allocation7], 4
      %s244 = int_to_ptr.vmem [resolvable:$true] %s243
      %249 = dma.vmem_to_hbm [thread:$0]  %s244, 512, %s2, [#allocation4], 128, 128, 8
    $region33: #{tpu_custom_call.1} parent=1 // pred_fallthru
      _
    // Predicated region
    $region34: #{tpu_custom_call.1} parent=1 // pred_check
      _
    $region35: #{tpu_custom_call.1} parent=1 // pred_check_branch
      %251 = sbr.rel (0) target = $region37
    $region36: #{tpu_custom_call.1} parent=1 // pred_region
      %252 = dma.done [#allocation4], 512
    $region37: #{tpu_custom_call.1} parent=1 // pred_fallthru
      _
    %253 = vsyncpa [#allocation3], 1
    %254 = vsyncpa [#allocation6], 1
    %255 = vsyncpa [#allocation4], 1

</llo_original>
